<compile_context>
chip_gen: v7x
topology: tpu7x:2x2x1
jax: 0.10.0
libtpu: 0.0.40
codegen_flags: <defaults>
</compile_context>

<pallas_src>
import functools

import jax
import jax.numpy as jnp
from jax.experimental import pallas as pl
from jax.experimental.pallas import tpu as pltpu


def _round_up(a: int, b: int) -> int:
    return (a + b - 1) // b * b


def _cdiv(a: int, b: int) -> int:
    return (a + b - 1) // b


def _balance_tile(dim: int, tile: int, align: int) -> int:
    """Clamp `tile` to the problem and re-balance so padding waste stays small."""
    tile = min(tile, _round_up(dim, align))
    n_blocks = _cdiv(dim, tile)
    return _round_up(_cdiv(dim, n_blocks), align)


def _linear_kernel(x_ref, w_ref, b_ref, o_ref):
    """One (tm, tn) output tile; K is the innermost (reduction) grid axis.

    The output block stays VMEM-resident across k, so we initialize it with the
    bias at k==0 and accumulate the MXU partial products directly into it.
    """
    k = pl.program_id(2)

    @pl.when(k == 0)
    def _init():
        o_ref[...] = jnp.broadcast_to(b_ref[...], o_ref.shape).astype(o_ref.dtype)

    o_ref[...] += jnp.dot(
        x_ref[...], w_ref[...], preferred_element_type=jnp.float32
    )


@functools.partial(jax.jit, static_argnames=("tm", "tn", "tk", "out_m", "out_n"))
def _linear_forward_padded(x, w_p, b_p, *, tm, tn, tk, out_m, out_n):
    """y = (x @ w_p + b_p)[:out_m, :out_n].

    x:    (M, Kp)  float32   (K already padded to Kp by the caller's layer prep)
    w_p:  (Kp, Np) float32   weight pre-transposed and pre-padded at rest
    b_p:  (1, Np)  float32   bias pre-padded at rest
    """
    M, Kp = x.shape
    Kp2, Np = w_p.shape
    assert Kp == Kp2, (Kp, Kp2)
    assert Kp % tk == 0 and Np % tn == 0, (Kp, tk, Np, tn)

    Mp = _round_up(M, tm)
    x_p = x if Mp == M else jnp.pad(x, ((0, Mp - M), (0, 0)))

    grid = (Mp // tm, Np // tn, Kp // tk)

    itemsize = x.dtype.itemsize
    cost = pl.CostEstimate(
        flops=2 * Mp * Np * Kp,
        bytes_accessed=(
            Mp * Kp * (Np // tn)      # x re-read once per N-block
            + Kp * Np * (Mp // tm)    # w re-read once per M-block
            + Mp * Np                 # output written once
            + Np                      # bias
        ) * itemsize,
        transcendentals=0,
    )

    out = pl.pallas_call(
        _linear_kernel,
        out_shape=jax.ShapeDtypeStruct((Mp, Np), jnp.float32),
        grid_spec=pltpu.PrefetchScalarGridSpec(
            num_scalar_prefetch=0,
            grid=grid,
            in_specs=[
                pl.BlockSpec((tm, tk), lambda i, j, k: (i, k)),   # x tile
                pl.BlockSpec((tk, tn), lambda i, j, k: (k, j)),   # w tile
                pl.BlockSpec((1, tn), lambda i, j, k: (0, j)),    # bias slice
            ],
            out_specs=pl.BlockSpec((tm, tn), lambda i, j, k: (i, j)),
        ),
        compiler_params=pltpu.CompilerParams(
            dimension_semantics=("parallel", "parallel", "arbitrary"),
            vmem_limit_bytes=64 * 1024 * 1024,
        ),
        cost_estimate=cost,
    )(x_p, w_p, b_p)

    if Mp != out_m or Np != out_n:
        out = out[:out_m, :out_n]
    return out


class PallasLinear:
    """JAX/Pallas equivalent of torch.nn.Linear(input_dim, output_dim).

    The weight/bias are transposed and padded ONCE at construction, so the
    per-call path only pads x along M.
    """

    def __init__(self, weight_out_in, bias, *, tm=256, tn=1024, tk=512):
        weight_out_in = jnp.asarray(weight_out_in, jnp.float32)
        bias = jnp.asarray(bias, jnp.float32)
        N, K = weight_out_in.shape
        assert bias.shape == (N,), bias.shape
        self.N, self.K = N, K

        # Tile sizes along the static (K, N) dims are fixed at construction.
        self.tm_default = tm
        self.tn = _balance_tile(N, tn, 128)
        self.tk = _balance_tile(K, tk, 128)
        Kp = _round_up(K, self.tk)
        Np = _round_up(N, self.tn)

        # Unpadded copies kept only for the tiny-shape XLA fast path.
        self.w_kn = weight_out_in.T            # (K, N)
        self.bias = bias                       # (N,)

        # Padded, pre-transposed params used by the Pallas path.
        self.w_p = jnp.pad(self.w_kn, ((0, Kp - K), (0, Np - N)))   # (Kp, Np)
        self.b_p = jnp.pad(bias, (0, Np - N)).reshape(1, Np)        # (1, Np)
        self.Kp, self.Np = Kp, Np

    def __call__(self, x, *, force_pallas=False):
        x = jnp.asarray(x, jnp.float32)
        M, K = x.shape
        assert K == self.K, (K, self.K)

        tm = _balance_tile(M, self.tm_default, 8)
        grid = (_cdiv(M, tm), self.Np // self.tn, self.Kp // self.tk)
        flops = 2 * M * self.N * self.K

        # Small-shape fast path: custom-call + padding overhead dominates.
        if not force_pallas and (flops < 1_000_000 or grid == (1, 1, 1)):
            return x @ self.w_kn + self.bias

        x_kp = x if self.Kp == K else jnp.pad(x, ((0, 0), (0, self.Kp - K)))
        return _linear_forward_padded(
            x_kp, self.w_p, self.b_p,
            tm=tm, tn=self.tn, tk=self.tk, out_m=M, out_n=self.N)


if __name__ == "__main__":
    key = jax.random.PRNGKey(0)

    # --- Test 1: the module's real (tiny) shapes: batch=8, in=32, out=16 -----
    batch, input_dim, output_dim = 8, 32, 16
    kx, kw, kb = jax.random.split(key, 3)
    bound = 1.0 / (input_dim ** 0.5)
    # PyTorch nn.Linear stores W as (out, in); PallasLinear re-lays it out once.
    weight = jax.random.uniform(kw, (output_dim, input_dim), jnp.float32,
                                minval=-bound, maxval=bound)
    bias = jax.random.uniform(kb, (output_dim,), jnp.float32,
                              minval=-bound, maxval=bound)
    x = jax.random.normal(kx, (batch, input_dim), jnp.float32)

    model = PallasLinear(weight, bias)
    y_ref = x @ weight.T + bias

    # Fast path (what the module would use at these shapes).
    y_fast = jax.block_until_ready(model(x))
    assert y_fast.shape == (batch, output_dim)
    assert jnp.allclose(y_fast, y_ref, atol=1e-5, rtol=1e-5)

    # Forced Pallas path to validate the kernel at the module's shapes too.
    y_pal = jax.block_until_ready(model(x, force_pallas=True))
    assert y_pal.shape == (batch, output_dim)
    assert jnp.allclose(y_pal, y_ref, atol=1e-5, rtol=1e-5)

    # --- Test 2: larger, non-aligned shapes to exercise the tiled grid path --
    M2, K2, N2 = 512, 384, 320
    k2x, k2w, k2b = jax.random.split(jax.random.PRNGKey(1), 3)
    x2 = jax.random.normal(k2x, (M2, K2), jnp.float32)
    w2 = jax.random.normal(k2w, (N2, K2), jnp.float32) * 0.02   # (out, in)
    b2 = jax.random.normal(k2b, (N2,), jnp.float32) * 0.02

    model2 = PallasLinear(w2, b2, tm=128, tn=128, tk=128)   # grid = (4, 3, 3)
    y2 = jax.block_until_ready(model2(x2))
    y2_ref = x2 @ w2.T + b2
    assert y2.shape == (M2, N2)
    assert jnp.allclose(y2, y2_ref, atol=1e-4, rtol=1e-4)

    print("KERNEL_OK")
</pallas_src>

<mosaic_0001>
module attributes {stable_mosaic.version = 11 : i64} {
  func.func @_linear_kernel(%arg0: i32, %arg1: i32, %arg2: i32, %arg3: memref<8x128xf32, #tpu.memory_space<vmem>>, %arg4: memref<128x128xf32, #tpu.memory_space<vmem>>, %arg5: memref<1x128xf32, #tpu.memory_space<vmem>>, %arg6: memref<8x128xf32, #tpu.memory_space<vmem>>) attributes {dimension_semantics = [#tpu.dimension_semantics<parallel>, #tpu.dimension_semantics<parallel>, #tpu.dimension_semantics<arbitrary>], iteration_bounds = array<i64: 1, 1, 1>, scalar_prefetch = 0 : i64, scratch_operands = 0 : i64, tpu.core_type = #tpu.core_type<tc>, window_params = [{transform_indices = @transform_0, window_bounds = array<i64: 8, 128>}, {transform_indices = @transform_1, window_bounds = array<i64: 128, 128>}, {transform_indices = @transform_2, window_bounds = array<i64: 1, 128>}, {transform_indices = @transform_3, window_bounds = array<i64: 8, 128>}]} {
    %c0_i32 = arith.constant 0 : i32
    %0 = arith.cmpi eq, %arg2, %c0_i32 : i32
    %1 = arith.extui %0 : i1 to i32
    %c0_i32_0 = arith.constant 0 : i32
    %2 = arith.cmpi ne, %1, %c0_i32_0 : i32
    scf.if %2 {
      %c0_8 = arith.constant 0 : index
      %c0_9 = arith.constant 0 : index
      %9 = vector.load %arg5[%c0_8, %c0_9] : memref<1x128xf32, #tpu.memory_space<vmem>>, vector<1x128xf32>
      %10 = vector.shape_cast %9 : vector<1x128xf32> to vector<1x128xf32>
      %11 = vector.broadcast %10 : vector<1x128xf32> to vector<8x128xf32>
      %c0_10 = arith.constant 0 : index
      %c0_11 = arith.constant 0 : index
      %12 = vector.load %arg6[%c0_10, %c0_11] : memref<8x128xf32, #tpu.memory_space<vmem>>, vector<8x128xf32>
      tpu.vector_store %arg6[%c0_10, %c0_11], %11 {strides = array<i32>} : memref<8x128xf32, #tpu.memory_space<vmem>>, vector<8x128xf32>,
    } else {
    }
    %c0 = arith.constant 0 : index
    %c0_1 = arith.constant 0 : index
    %3 = vector.load %arg6[%c0, %c0_1] : memref<8x128xf32, #tpu.memory_space<vmem>>, vector<8x128xf32>
    %c0_2 = arith.constant 0 : index
    %c0_3 = arith.constant 0 : index
    %4 = vector.load %arg3[%c0_2, %c0_3] : memref<8x128xf32, #tpu.memory_space<vmem>>, vector<8x128xf32>
    %c0_4 = arith.constant 0 : index
    %c0_5 = arith.constant 0 : index
    %5 = vector.load %arg4[%c0_4, %c0_5] : memref<128x128xf32, #tpu.memory_space<vmem>>, vector<128x128xf32>
    %cst = arith.constant dense<0.000000e+00> : vector<8x128xf32>
    %6 = tpu.matmul %4, %5, %cst {dimension_numbers = #tpu.dot_dimension_numbers<[1], [0], [0], [1], [0, 0, 1, 1], [], []>} : vector<8x128xf32>, vector<128x128xf32>, vector<8x128xf32> -> vector<8x128xf32>
    %7 = arith.addf %3, %6 : vector<8x128xf32>
    %c0_6 = arith.constant 0 : index
    %c0_7 = arith.constant 0 : index
    %8 = vector.load %arg6[%c0_6, %c0_7] : memref<8x128xf32, #tpu.memory_space<vmem>>, vector<8x128xf32>
    tpu.vector_store %arg6[%c0_6, %c0_7], %7 {strides = array<i32>} : memref<8x128xf32, #tpu.memory_space<vmem>>, vector<8x128xf32>,
    return
  }
  func.func @transform_0(%arg0: i32, %arg1: i32, %arg2: i32) -> (i32, i32) {
    %c0_i32 = arith.constant 0 : i32
    return %arg0, %arg2 : i32, i32
  }
  func.func @transform_1(%arg0: i32, %arg1: i32, %arg2: i32) -> (i32, i32) {
    %c0_i32 = arith.constant 0 : i32
    return %arg2, %arg1 : i32, i32
  }
  func.func @transform_2(%arg0: i32, %arg1: i32, %arg2: i32) -> (i32, i32) {
    %c0_i32 = arith.constant 0 : i32
    %c0_i32_0 = arith.constant 0 : i32
    return %c0_i32, %arg1 : i32, i32
  }
  func.func @transform_3(%arg0: i32, %arg1: i32, %arg2: i32) -> (i32, i32) {
    %c0_i32 = arith.constant 0 : i32
    return %arg0, %arg1 : i32, i32
  }
}

</mosaic_0001>

<llo_original>
// kernel: _linear_forward_padded.1
$region0: #{_linear_forward_padded.1}
  #allocation0 [shape = 'u32[]', space=smem, size = 0x4, offset = 0x4, fixed_abs, tag = 'smem constant byte address 0x4 - core index']
  #allocation1 [shape = 'u32[144,128]{1,0:T(1,128)}', space=vmem, size = 0x12000, scoped, tag = 'internal scratch']
  %s0 = inlined_call_operand.hbm [shape: f32[8,128], index: 0, kind: input, shape index: {}]
  %s1 = inlined_call_operand.hbm [shape: f32[128,128], index: 1, kind: input, shape index: {}]
  %s2 = inlined_call_operand.hbm [shape: f32[1,128], index: 2, kind: input, shape index: {}]
  %s3 = inlined_call_operand.hbm [shape: f32[8,128], index: 3, kind: output, shape index: {}]
  %s4 = sld [smem:[#allocation0]]
  $region38: #{_linear_forward_padded.1} parent=0
    _
  %s6 = ssub.s32 1, %s4
  %s7 = scalar_select 0, %s6, %s4
  $region1: #{_linear_forward_padded.1} parent=0
    #allocation2 [shape = 'u8[4096]{0}', space=vmem, size = 0x1000, scoped, tag = 'input window, operand 0, single buffered']
    #allocation3 [shape = 's32[1]{0}', space=sflag, size = 0x4, scoped, tag = 'scoped memory for _linear_forward_padded.1']
    #allocation4 [shape = 's32[1]{0}', space=sflag, size = 0x4, scoped, tag = 'scoped memory for _linear_forward_padded.1']
    #allocation5 [shape = 'u8[65536]{0}', space=vmem, size = 0x10000, scoped, tag = 'input window, operand 1, single buffered']
    #allocation6 [shape = 's32[1]{0}', space=sflag, size = 0x4, scoped, tag = 'scoped memory for _linear_forward_padded.1']
    #allocation7 [shape = 'u8[512]{0}', space=vmem, size = 0x400, scoped, tag = 'input window, operand 2, single buffered']
    #allocation8 [shape = 'u8[4096]{0}', space=vmem, size = 0x1000, scoped, tag = 'output window, operand 0, single buffered']
    %8 = vsyncpa [#allocation3], 0
    %9 = vsyncpa [#allocation6], 0
    %10 = vsyncpa [#allocation4], 0
    // Predicated region
    $region2: #{_linear_forward_padded.1} parent=1 // pred_check
      _
    $region3: #{_linear_forward_padded.1} parent=1 // pred_check_branch
      %12 = sbr.rel (0) target = $region5
    $region4: #{_linear_forward_padded.1} parent=1 // pred_region
      %s14 = ssub.s32 128, 128
      %15 = vsyncadd [#allocation3], %s14
      %s17 = sshll.u32 [#allocation2], 4
      %s18 = int_to_ptr.vmem [resolvable:$true] %s17
      %20 = dma.hbm_to_vmem [thread:$0]  %s0, 128, %s18, [#allocation3]
    $region5: #{_linear_forward_padded.1} parent=1 // pred_fallthru
      _
    // Predicated region
    $region6: #{_linear_forward_padded.1} parent=1 // pred_check
      _
    $region7: #{_linear_forward_padded.1} parent=1 // pred_check_branch
      %22 = sbr.rel (0) target = $region9
    $region8: #{_linear_forward_padded.1} parent=1 // pred_region
      %s24 = ssub.s32 2048, 2048
      %25 = vsyncadd [#allocation6], %s24
      %s26 = sshll.u32 [#allocation5], 4
      %s27 = int_to_ptr.vmem [resolvable:$true] %s26
      %32 = dma.hbm_to_vmem [thread:$0]  %s1, 2048, %s27, [#allocation6], 128, 128, 8
    $region9: #{_linear_forward_padded.1} parent=1 // pred_fallthru
      _
    // Predicated region
    $region10: #{_linear_forward_padded.1} parent=1 // pred_check
      _
    $region11: #{_linear_forward_padded.1} parent=1 // pred_check_branch
      %34 = sbr.rel (0) target = $region13
    $region12: #{_linear_forward_padded.1} parent=1 // pred_region
      %s36 = ssub.s32 16, 16
      %37 = vsyncadd [#allocation6], %s36
      %s39 = sshll.u32 [#allocation7], 4
      %s40 = int_to_ptr.vmem [resolvable:$true] %s39
      %42 = dma.hbm_to_vmem [thread:$0]  %s2, 16, %s40, [#allocation6]
    $region13: #{_linear_forward_padded.1} parent=1 // pred_fallthru
      _
    // Predicated region
    $region14: #{_linear_forward_padded.1} parent=1 // pred_check
      _
    $region15: #{_linear_forward_padded.1} parent=1 // pred_check_branch
      %44 = sbr.rel (0) target = $region17
    $region16: #{_linear_forward_padded.1} parent=1 // pred_region
      %45 = dma.done [#allocation3], 128
    $region17: #{_linear_forward_padded.1} parent=1 // pred_fallthru
      _
    // Predicated region
    $region18: #{_linear_forward_padded.1} parent=1 // pred_check
      _
    $region19: #{_linear_forward_padded.1} parent=1 // pred_check_branch
      %47 = sbr.rel (0) target = $region21
    $region20: #{_linear_forward_padded.1} parent=1 // pred_region
      %48 = dma.done [#allocation6], 2048
    $region21: #{_linear_forward_padded.1} parent=1 // pred_fallthru
      _
    // Predicated region
    $region22: #{_linear_forward_padded.1} parent=1 // pred_check
      _
    $region23: #{_linear_forward_padded.1} parent=1 // pred_check_branch
      %50 = sbr.rel (0) target = $region25
    $region24: #{_linear_forward_padded.1} parent=1 // pred_region
      %51 = dma.done [#allocation6], 16
    $region25: #{_linear_forward_padded.1} parent=1 // pred_fallthru
      _
    %p52 = scmp.eq.s32.totalorder 0, 0
    // Predicated region
    $region26: #{_linear_forward_padded.1} parent=1 // pred_check
      %p53 = pneg %p52
    $region27: #{_linear_forward_padded.1} parent=1 // pred_check_branch
      %55 = sbr.rel (%p53) target = $region29
    $region28: #{_linear_forward_padded.1} parent=1 // pred_region
      %v56 = vld [vmem:[#allocation7] sm:$0x1]
      %v58 = vlaneseq
      %v59 = vshrl.u32 %v58, 7
      %v60 = vsub.s32 0, %v59
      %v61 = vrot.slane %v56, %v60
      %63 = vst [vmem:[#allocation8] sm:$0xff] %v61
    $region29: #{_linear_forward_padded.1} parent=1 // pred_fallthru
      _
    %v64 = vld [vmem:[#allocation8] sm:$0xff]
    %v65 = vld [vmem:[#allocation2] sm:$0xff]
    %v66 = vld [vmem:[#allocation5] sm:$0xff]
    %v67 = vld [vmem:[#allocation5 + $0x8] sm:$0xff]
    %v68 = vld [vmem:[#allocation5 + $0x10] sm:$0xff]
    %v69 = vld [vmem:[#allocation5 + $0x18] sm:$0xff]
    %v70 = vld [vmem:[#allocation5 + $0x20] sm:$0xff]
    %v71 = vld [vmem:[#allocation5 + $0x28] sm:$0xff]
    %v72 = vld [vmem:[#allocation5 + $0x30] sm:$0xff]
    %v73 = vld [vmem:[#allocation5 + $0x38] sm:$0xff]
    %v74 = vld [vmem:[#allocation5 + $0x40] sm:$0xff]
    %v75 = vld [vmem:[#allocation5 + $0x48] sm:$0xff]
    %v76 = vld [vmem:[#allocation5 + $0x50] sm:$0xff]
    %v77 = vld [vmem:[#allocation5 + $0x58] sm:$0xff]
    %v78 = vld [vmem:[#allocation5 + $0x60] sm:$0xff]
    %v79 = vld [vmem:[#allocation5 + $0x68] sm:$0xff]
    %v80 = vld [vmem:[#allocation5 + $0x70] sm:$0xff]
    %v81 = vld [vmem:[#allocation5 + $0x78] sm:$0xff]
    %82 = vmatprep.subr.mxu0 0.0
    %83 = vmatpush1.msra.mxu0 %v66
    %84 = vmatprep.subr.mxu0 0.0
    %85 = vmatpush1.msra.mxu0 %v67
    %86 = vmatprep.subr.mxu0 0.0
    %87 = vmatpush1.msra.mxu0 %v68
    %88 = vmatprep.subr.mxu0 0.0
    %89 = vmatpush1.msra.mxu0 %v69
    %90 = vmatprep.subr.mxu0 0.0
    %91 = vmatpush1.msra.mxu0 %v70
    %92 = vmatprep.subr.mxu0 0.0
    %93 = vmatpush1.msra.mxu0 %v71
    %94 = vmatprep.subr.mxu0 0.0
    %95 = vmatpush1.msra.mxu0 %v72
    %96 = vmatprep.subr.mxu0 0.0
    %97 = vmatpush1.msra.mxu0 %v73
    %98 = vmatprep.subr.mxu0 0.0
    %99 = vmatpush1.msra.mxu0 %v74
    %100 = vmatprep.subr.mxu0 0.0
    %101 = vmatpush1.msra.mxu0 %v75
    %102 = vmatprep.subr.mxu0 0.0
    %103 = vmatpush1.msra.mxu0 %v76
    %104 = vmatprep.subr.mxu0 0.0
    %105 = vmatpush1.msra.mxu0 %v77
    %106 = vmatprep.subr.mxu0 0.0
    %107 = vmatpush1.msra.mxu0 %v78
    %108 = vmatprep.subr.mxu0 0.0
    %109 = vmatpush1.msra.mxu0 %v79
    %110 = vmatprep.subr.mxu0 0.0
    %111 = vmatpush1.msra.mxu0 %v80
    %112 = vmatprep.subr.mxu0 0.0
    %113 = vmatpush1.msra.mxu0 %v81
    %114 = vmatprep.subr.mxu0 0.0
    %115 = vmatpush1.msra.mxu0 0.0
    %116 = vmatprep.subr.mxu0 0.0
    %117 = vmatpush1.msra.mxu0 0.0
    %118 = vmatprep.subr.mxu0 0.0
    %119 = vmatpush1.msra.mxu0 0.0
    %120 = vmatprep.subr.mxu0 0.0
    %121 = vmatpush1.msra.mxu0 0.0
    %122 = vmatprep.subr.mxu0 0.0
    %123 = vmatpush1.msra.mxu0 0.0
    %124 = vmatprep.subr.mxu0 0.0
    %125 = vmatpush1.msra.mxu0 0.0
    %126 = vmatprep.subr.mxu0 0.0
    %127 = vmatpush1.msra.mxu0 0.0
    %128 = vmatprep.subr.mxu0 0.0
    %129 = vmatpush1.msra.mxu0 0.0
    %130 = vmatprep.subr.mxu0 0.0
    %131 = vmatpush1.msra.mxu0 0.0
    %132 = vmatprep.subr.mxu0 0.0
    %133 = vmatpush1.msra.mxu0 0.0
    %134 = vmatprep.subr.mxu0 0.0
    %135 = vmatpush1.msra.mxu0 0.0
    %136 = vmatprep.subr.mxu0 0.0
    %137 = vmatpush1.msra.mxu0 0.0
    %138 = vmatprep.subr.mxu0 0.0
    %139 = vmatpush1.msra.mxu0 0.0
    %140 = vmatprep.subr.mxu0 0.0
    %141 = vmatpush1.msra.mxu0 0.0
    %142 = vmatprep.subr.mxu0 0.0
    %143 = vmatpush1.msra.mxu0 0.0
    %144 = vmatprep.subr.mxu0 0.0
    %145 = vmatpush1.msra.mxu0 0.0
    %146 = vmatprep.mubr.f32.mxu0 0.0
    %147 = vmatmul.mubr.f32.gmra.mrb[0].mxu0 %v65
    %v148 = vpop.f32.mrb[0].mxu0
    %v149 = vadd.f32 0.0, %v148
    %v150 = vpop.f32.mrb[0].mxu0
    %151 = vdwg.mxu0
    %v152 = vadd.f32 %v64, %v149
    %153 = vst [vmem:[#allocation8] sm:$0xff] %v152
    // Predicated region
    $region30: #{_linear_forward_padded.1} parent=1 // pred_check
      _
    $region31: #{_linear_forward_padded.1} parent=1 // pred_check_branch
      %155 = sbr.rel (0) target = $region33
    $region32: #{_linear_forward_padded.1} parent=1 // pred_region
      %s157 = ssub.s32 128, 128
      %158 = vsyncadd [#allocation4], %s157
      %s160 = sshll.u32 [#allocation8], 4
      %s161 = int_to_ptr.vmem [resolvable:$true] %s160
      %163 = dma.vmem_to_hbm [thread:$0]  %s161, 128, %s3, [#allocation4]
    $region33: #{_linear_forward_padded.1} parent=1 // pred_fallthru
      _
    // Predicated region
    $region34: #{_linear_forward_padded.1} parent=1 // pred_check
      _
    $region35: #{_linear_forward_padded.1} parent=1 // pred_check_branch
      %165 = sbr.rel (0) target = $region37
    $region36: #{_linear_forward_padded.1} parent=1 // pred_region
      %166 = dma.done [#allocation4], 128
    $region37: #{_linear_forward_padded.1} parent=1 // pred_fallthru
      _
    %167 = vsyncpa [#allocation3], 1
    %168 = vsyncpa [#allocation6], 1
    %169 = vsyncpa [#allocation4], 1

</llo_original>
